<compile_context>
chip_gen: v6e
topology: v6e:2x2x1
jax: 0.10.0
libtpu: 0.0.40
codegen_flags: <defaults>
</compile_context>

<pallas_src>
import functools
import math

import jax
import jax.numpy as jnp
from jax.experimental import pallas as pl
from jax.experimental.pallas import tpu as pltpu

_EPS = 1e-5
_TM_MAX = 256                      # max output rows per grid step (mult. of 16)
_VMEM_LIMIT = 32 * 1024 * 1024     # explicit scoped-VMEM budget (safe on v5e/v6e/v7x)


def _ceil_to(v, m):
    return ((v + m - 1) // m) * m


# ---------------------------------------------------------------------------
# Pallas kernels (the hot path)
# ---------------------------------------------------------------------------
def _conv_kernel(x_ref, w_ref, sc_ref, sh_ref, *rest,
                 row_offsets, tm, relu, n_pre):
    """One conv row-tile.

    x_ref : (1, L, kw*K) bf16  flat padded image, kw taps folded into channels
    w_ref : (kh, kw*K, C) bf16 per-kernel-row weight matrices
    sc/sh : (1, C) f32         fused bias / eval-BatchNorm epilogue
    rest  : n_pre pre-ReLU residual refs, then post-ReLU residual refs, then
            o_ref -- all (1, tm, C) blocks on the same output row grid.
    """
    res_refs, o_ref = rest[:-1], rest[-1]
    row0 = pl.multiple_of(pl.program_id(1) * tm, 16)
    acc = None
    for ki, off in enumerate(row_offsets):                 # kh <= 3 big-K dots
        lhs = x_ref[0, pl.ds(row0 + off, tm), :]
        part = jnp.dot(lhs, w_ref[ki], preferred_element_type=jnp.float32)
        acc = part if acc is None else acc + part
    y = acc * sc_ref[...] + sh_ref[...]
    for r in res_refs[:n_pre]:                             # res(x) + block(x)
        y = y + r[0].astype(jnp.float32)
    if relu:
        y = jnp.maximum(y, 0.0)
    for r in res_refs[n_pre:]:                             # post-ReLU skip adds
        y = y + r[0].astype(jnp.float32)
    o_ref[0] = y.astype(o_ref.dtype)


def _add_kernel(*refs, relu):
    """Fused N-way elementwise add (+ optional ReLU) on lane-dense tiles."""
    *ins, o_ref = refs
    acc = ins[0][...].astype(jnp.float32)
    for r in ins[1:]:
        acc = acc + r[...].astype(jnp.float32)
    if relu:
        acc = jnp.maximum(acc, 0.0)
    o_ref[...] = acc.astype(o_ref.dtype)


# ---------------------------------------------------------------------------
# Conv wrappers (padding / fold / phase bookkeeping; all FLOPs run in kernels)
# ---------------------------------------------------------------------------
def _conv_core(x, w, scale, shift, kh, kw, ph, pw, relu=False,
               res_pre=(), res_post=()):
    """Stride-1 cross-correlation with kw folded into channels.

    x: (N, H, W, Cin) NHWC (any float dtype, cast to bf16).
    Returns (N, Ho, Wo, Cout) bf16.
    """
    x = x.astype(jnp.bfloat16)
    n, h, wd, cin = x.shape
    kh_w, kwk, cout = w.shape
    assert kh_w == kh
    k = kwk // kw
    if cin != k:                      # stem convs: Cin padded to 8 at pack time
        x = jnp.pad(x, ((0, 0), (0, 0), (0, 0), (0, k - cin)))
    hp, wp = h + 2 * ph, wd + 2 * pw
    ho, wo = hp - kh + 1, wp - kw + 1
    assert ho > 0 and wo > 0, "conv output size must be positive"
    m = ho * wp                       # output rows on the (Ho, Wp) row grid

    # Row tiling: <= _TM_MAX rows per grid step, 16-aligned (bf16 sublanes).
    j_tiles = -(-m // _TM_MAX)
    tm = _ceil_to(-(-m // j_tiles), 16)
    m_pad = tm * j_tiles

    # Pad rows so the deepest tap window of the last tile stays in bounds.
    extra_flat = m_pad + (kh - 1) * wp - hp * wp
    extra_h = -(-extra_flat // wp) if extra_flat > 0 else 0
    xp = jnp.pad(x, ((0, 0), (ph, ph + extra_h), (pw, pw), (0, 0)))

    # kw-fold: channels of pixels (i, j .. j+kw-1) side by side, so each MXU
    # dot contracts over kw*K instead of K (much better MXU depth occupancy).
    if kw > 1:
        xp = jnp.concatenate(
            [xp if kj == 0 else
             jnp.pad(xp[:, :, kj:, :], ((0, 0), (0, 0), (0, kj), (0, 0)))
             for kj in range(kw)], axis=-1)
    L = (hp + extra_h) * wp
    xf = xp.reshape(n, L, kw * k)

    def _prep_res(r):
        # Residuals live on the conv's (Ho, Wp) row grid (garbage cols sliced
        # off later, so zero-padding them is fine).
        r = r.astype(jnp.bfloat16)
        assert r.shape == (n, ho, wo, cout), (r.shape, (n, ho, wo, cout))
        r = jnp.pad(r, ((0, 0), (0, 0), (0, wp - wo), (0, 0)))
        return jnp.pad(r.reshape(n, m, cout), ((0, 0), (0, m_pad - m), (0, 0)))

    res = [_prep_res(r) for r in tuple(res_pre) + tuple(res_post)]
    n_res = len(res)

    row_offsets = tuple(ki * wp for ki in range(kh))
    flops = 2 * n * m_pad * kh * kwk * cout
    bytes_accessed = (n * L * kw * k + kh * kwk * cout
                      + (1 + n_res) * n * m_pad * cout) * 2 + 2 * cout * 8

    out = pl.pallas_call(
        functools.partial(_conv_kernel, row_offsets=row_offsets, tm=tm,
                          relu=relu, n_pre=len(res_pre)),
        out_shape=jax.ShapeDtypeStruct((n, m_pad, cout), jnp.bfloat16),
        grid=(n, j_tiles),
        in_specs=[
            pl.BlockSpec((1, L, kw * k), lambda b, j: (b, 0, 0)),
            pl.BlockSpec((kh, kwk, cout), lambda b, j: (0, 0, 0)),
            pl.BlockSpec((1, cout), lambda b, j: (0, 0)),
            pl.BlockSpec((1, cout), lambda b, j: (0, 0)),
        ] + [pl.BlockSpec((1, tm, cout), lambda b, j: (b, j, 0))
             for _ in range(n_res)],
        out_specs=pl.BlockSpec((1, tm, cout), lambda b, j: (b, j, 0)),
        compiler_params=pltpu.CompilerParams(
            dimension_semantics=("parallel", "parallel"),
            vmem_limit_bytes=_VMEM_LIMIT),
        cost_estimate=pl.CostEstimate(flops=flops, transcendentals=0,
                                      bytes_accessed=bytes_accessed),
    )(xf, w, scale, shift, *res)
    return out[:, :m, :].reshape(n, ho, wp, cout)[:, :, :wo, :]


def _conv_s2(x, pk):
    """3x3 / stride-2 / pad-0 conv via space-to-depth phase packing."""
    n, h, wd, cin = x.shape
    he, we = h + (h % 2), wd + (wd % 2)
    if (he, we) != (h, wd):
        x = jnp.pad(x, ((0, 0), (0, he - h), (0, we - wd), (0, 0)))
    phases = [x[:, pi::2, pj::2, :] for pi in range(2) for pj in range(2)]
    xcat = jnp.concatenate(phases, axis=-1)             # (N, H/2, W/2, 4*Cin)
    return _conv_core(xcat, pk["w"], pk["scale"], pk["shift"], 2, 2, 0, 0)


def _conv_transpose(x, pk):
    """3x3 / stride-2 / pad-0 ConvTranspose2d: the four output phases come out
    of ONE 2x2-tap conv stacked on the channel axis; they are interleaved with
    a single reshape/transpose (no strided scatters into a zeros tensor)."""
    n, h, wd, _ = x.shape
    cout = pk["cout"]
    y4 = _conv_core(x, pk["w"], pk["scale"], pk["shift"], 2, 2, 1, 1)
    # y4: (N, H+1, W+1, 4*Cout), channels ordered (phase_row, phase_col, Cout).
    y = y4.reshape(n, h + 1, wd + 1, 2, 2, cout)
    y = jnp.transpose(y, (0, 1, 3, 2, 4, 5)).reshape(n, 2 * h + 2, 2 * wd + 2, cout)
    return y[:, :2 * h + 1, :2 * wd + 1, :]


def conv_apply(pk, x, relu=False, res_pre=(), res_post=()):
    """Apply a pre-packed conv (+fused bias / eval-BN / residual adds / ReLU)."""
    if pk["kind"] == "s1":
        return _conv_core(x, pk["w"], pk["scale"], pk["shift"],
                          pk["kh"], pk["kw"], pk["ph"], pk["pw"],
                          relu=relu, res_pre=res_pre, res_post=res_post)
    assert not relu and not res_pre and not res_post
    if pk["kind"] == "s2":
        return _conv_s2(x, pk)
    return _conv_transpose(x, pk)


def _add_act(tensors, relu=False):
    """Fused elementwise sum of 2-3 same-shape tensors (optional ReLU), bf16."""
    shape = tensors[0].shape
    n_el = tensors[0].size
    lane = 1024 if n_el >= 16 * 1024 else 128
    npad = _ceil_to(n_el, 16 * lane)
    rows = npad // lane
    flats = [jnp.pad(t.reshape(-1).astype(jnp.bfloat16), (0, npad - n_el)
                     ).reshape(rows, lane) for t in tensors]
    tr = rows
    for cand in (128, 64, 32, 16):
        if rows % cand == 0 and rows // cand >= 2:
            tr = cand
            break
    out = pl.pallas_call(
        functools.partial(_add_kernel, relu=relu),
        out_shape=jax.ShapeDtypeStruct((rows, lane), jnp.bfloat16),
        grid=(rows // tr,),
        in_specs=[pl.BlockSpec((tr, lane), lambda i: (i, 0)) for _ in tensors],
        out_specs=pl.BlockSpec((tr, lane), lambda i: (i, 0)),
        compiler_params=pltpu.CompilerParams(
            dimension_semantics=("parallel",), vmem_limit_bytes=_VMEM_LIMIT),
    )(*flats)
    return out.reshape(-1)[:n_el].reshape(shape)


# ---------------------------------------------------------------------------
# Deterministic PyTorch-style init + one-time weight packing
# ---------------------------------------------------------------------------
def _init_conv_pt(key, cout, cin, kh, kw):
    kw_, kb = jax.random.split(key)
    bound = 1.0 / math.sqrt(cin * kh * kw)
    w = jax.random.uniform(kw_, (cout, cin, kh, kw), jnp.float32, -bound, bound)
    b = jax.random.uniform(kb, (cout,), jnp.float32, -bound, bound)
    return w, b


def _init_convT_pt(key, cin, cout, kh, kw):
    kw_, kb = jax.random.split(key)
    bound = 1.0 / math.sqrt(cout * kh * kw)
    w = jax.random.uniform(kw_, (cin, cout, kh, kw), jnp.float32, -bound, bound)
    b = jax.random.uniform(kb, (cout,), jnp.float32, -bound, bound)
    return w, b


def _default_bn(c):
    return {"gamma": jnp.ones((c,), jnp.float32), "beta": jnp.zeros((c,), jnp.float32),
            "mean": jnp.zeros((c,), jnp.float32), "var": jnp.ones((c,), jnp.float32)}


def _fold_bn(b, bn):
    """Fold conv bias + eval-mode BatchNorm into (scale, shift)."""
    if bn is None:
        scale, shift = jnp.ones_like(b), b
    else:
        scale = bn["gamma"] / jnp.sqrt(bn["var"] + _EPS)
        shift = bn["beta"] + (b - bn["mean"]) * scale
    return (scale.reshape(1, -1).astype(jnp.float32),
            shift.reshape(1, -1).astype(jnp.float32))


def _pack_conv(w, b, bn=None, padding=(0, 0)):
    """Conv2d (stride 1) -> (kh, kw*K, Cout) bf16, kw folded into channels."""
    cout, cin, kh, kw = w.shape
    k = _ceil_to(cin, 8)
    wt = jnp.transpose(w, (2, 3, 1, 0))                      # (kh, kw, cin, cout)
    if k != cin:
        wt = jnp.pad(wt, ((0, 0), (0, 0), (0, k - cin), (0, 0)))
    scale, shift = _fold_bn(b, bn)
    return {"kind": "s1", "w": wt.reshape(kh, kw * k, cout).astype(jnp.bfloat16),
            "scale": scale, "shift": shift,
            "kh": kh, "kw": kw, "ph": padding[0], "pw": padding[1]}


def _pack_conv_s2(w, b):
    """Conv2d 3x3 / stride 2 / pad 0 -> 2x2-tap conv over space-to-depth
    phases with the column taps folded into channels: (2, 8*Cin, Cout)."""
    cout, cin, kh, kw = w.shape
    wt = jnp.transpose(w, (2, 3, 1, 0))                      # (kh, kw, cin, cout)
    zeros = jnp.zeros((cin, cout), jnp.float32)
    taps = []
    for di in range(2):
        for dj in range(2):
            rows = []
            for pi in range(2):
                for pj in range(2):
                    ki, kj = 2 * di + pi, 2 * dj + pj
                    rows.append(wt[ki, kj] if (ki < kh and kj < kw) else zeros)
            taps.append(jnp.concatenate(rows, axis=0))       # (4*cin, cout)
    w2 = jnp.stack([jnp.concatenate([taps[2 * di + dj] for dj in range(2)], axis=0)
                    for di in range(2)], axis=0)             # (2, 8*cin, cout)
    scale, shift = _fold_bn(b, None)
    return {"kind": "s2", "w": w2.astype(jnp.bfloat16), "scale": scale, "shift": shift}


def _pack_convT(w, b):
    """ConvTranspose2d 3x3 / stride 2 / pad 0 -> one 2x2-tap conv whose output
    channels hold the four output phases; column taps folded: (2, 2*Cin, 4*Cout)."""
    cin, cout = w.shape[0], w.shape[1]
    wt = jnp.transpose(w, (2, 3, 0, 1))                      # (kh, kw, cin, cout)
    zeros = jnp.zeros((cin, cout), jnp.float32)
    taps = []
    for di in range(2):
        for dj in range(2):
            p00 = wt[2 - 2 * di, 2 - 2 * dj]
            p01 = wt[2 - 2 * di, 1] if dj == 1 else zeros
            p10 = wt[1, 2 - 2 * dj] if di == 1 else zeros
            p11 = wt[1, 1] if (di == 1 and dj == 1) else zeros
            taps.append(jnp.concatenate([p00, p01, p10, p11], axis=1))  # (cin, 4*cout)
    w2 = jnp.stack([jnp.concatenate([taps[2 * di + dj] for dj in range(2)], axis=0)
                    for di in range(2)], axis=0)             # (2, 2*cin, 4*cout)
    scale = jnp.ones((1, 4 * cout), jnp.float32)
    shift = jnp.tile(b.reshape(1, cout), (1, 4)).astype(jnp.float32)
    return {"kind": "tconv", "w": w2.astype(jnp.bfloat16),
            "scale": scale, "shift": shift, "cout": cout}


def _init_resblock(key, in_dim, out_dim, stride=1):
    ks = jax.random.split(key, 3)
    p = {"c1": _pack_conv(*_init_conv_pt(ks[0], out_dim, in_dim, 3, 3),
                          bn=_default_bn(out_dim), padding=(1, 1)),
         "c2": _pack_conv(*_init_conv_pt(ks[1], out_dim, out_dim, 3, 3),
                          bn=_default_bn(out_dim), padding=(1, 1))}
    if stride != 1 or in_dim != out_dim:
        # TODO(synk): every ResBlock in this model uses stride=1 & in==out; the
        # packed projection path only covers the 1x1 channel-projection case.
        p["cres"] = _pack_conv(*_init_conv_pt(ks[2], out_dim, in_dim, 1, 1),
                               bn=_default_bn(out_dim), padding=(0, 0))
    return p


def _init_downblock(key, cin, cout):
    ks = jax.random.split(key, 5)
    cc = cout // 2
    return {"res1": _init_resblock(ks[0], cin, cout),
            "res2": _init_resblock(ks[1], cout, cout),
            "res3": _init_resblock(ks[2], cout, cout),
            "res_conv": _pack_conv_s2(*_init_conv_pt(ks[3], cc, cout, 3, 3)),
            "out_conv": _pack_conv_s2(*_init_conv_pt(ks[4], cc, cout, 3, 3))}


def _init_upblock(key, cin, cout):
    ks = jax.random.split(key, 5)
    cc = cout * 2
    return {"res1": _init_resblock(ks[0], cin, cout),
            "res2": _init_resblock(ks[1], cout, cout),
            "res3": _init_resblock(ks[2], cout, cout),
            "res_conv": _pack_convT(*_init_convT_pt(ks[3], cout, cc, 3, 3)),
            "out_conv": _pack_convT(*_init_convT_pt(ks[4], cout, cc, 3, 3))}


def init_pixelcnnpp(key):
    ks = jax.random.split(key, 10)
    # TODO(synk): ResBlock.__init__ rejects the kernel_size kwarg that Down/UpBlock
    # pass in the reference; ResBlock's hard-coded 3x3 convs are used here.
    return {"conv1": _pack_conv(*_init_conv_pt(ks[0], 32, 3, 2, 3)),
            "conv2": _pack_conv(*_init_conv_pt(ks[1], 32, 3, 1, 3)),
            "conv3": _pack_conv(*_init_conv_pt(ks[2], 224, 32, 2, 3)),
            "conv4": _pack_conv(*_init_conv_pt(ks[3], 224, 32, 1, 3)),
            "dblock1": _init_downblock(ks[4], 32, 32),
            "dblock2": _init_downblock(ks[5], 16, 16),
            "dblock3": _init_downblock(ks[6], 8, 8),
            "ublock1": _init_upblock(ks[7], 8, 8),
            "ublock2": _init_upblock(ks[8], 16, 16),
            "ublock3": _init_upblock(ks[9], 32, 32)}


# ---------------------------------------------------------------------------
# Block forwards (mirror the PyTorch modules; activations are NHWC bf16)
# ---------------------------------------------------------------------------
def resblock_fwd(p, x, post_residuals=()):
    h = conv_apply(p["c1"], x, relu=True)          # Conv + BN + ReLU fused
    # TODO(synk): Dropout(0.5) is eval-mode identity here.
    r = conv_apply(p["cres"], x) if "cres" in p else x
    # F.relu(res(x) + block(x)) [+ the caller's post-ReLU skip tensors]: all
    # fused into the second conv's epilogue -- no separate add kernel.
    return conv_apply(p["c2"], h, relu=True, res_pre=(r,),
                      res_post=tuple(post_residuals))


def downblock_fwd(p, x, res_x, final=False):
    x1 = resblock_fwd(p["res1"], x)                               # dropout = identity
    x2 = resblock_fwd(p["res2"], x1)
    x2 = resblock_fwd(p["res3"], x2, post_residuals=(res_x,))     # skip add fused
    res_out = conv_apply(p["res_conv"], x1)
    out = conv_apply(p["out_conv"], x2)
    if final:
        return out, res_out, x2, x1
    return out, res_out


def upblock_fwd(p, top, bottom, top_res, bottom_res):
    x1 = resblock_fwd(p["res1"], _add_act([top, top_res]))        # dropout = identity
    x2 = resblock_fwd(p["res2"], x1)
    x2 = resblock_fwd(p["res3"], x2, post_residuals=(bottom, bottom_res))
    res_out = conv_apply(p["res_conv"], x1)
    out = conv_apply(p["out_conv"], x2)
    return out, res_out


def pixelcnnpp_forward(p, x):
    """Verbatim wiring of PixelCNNPP.forward (NCHW in / NCHW out).

    # TODO(synk): the reference graph is not executable for ANY input shape
    # (PyTorch itself fails): dblock1 adds an H-row tensor to an (H-1)-row
    # tensor, the UpBlock skips mix 4-vs-8 and 64-vs-32 channels, and
    # conv3/conv4 outputs differ by one row before the final add.  The wiring
    # is reproduced unchanged; __main__ exercises every layer / block (all
    # Pallas kernels) on shape-consistent inputs instead.
    """
    xh = jnp.transpose(x, (0, 2, 3, 1)).astype(jnp.bfloat16)   # NCHW -> NHWC once
    u1 = conv_apply(p["conv1"], xh)
    u2 = conv_apply(p["conv2"], xh)
    x1, x2 = downblock_fwd(p["dblock1"], u2, u1)
    x3, x4 = downblock_fwd(p["dblock2"], x2, x1)
    x5, x6, x7, x8 = downblock_fwd(p["dblock3"], x4, x3, final=True)
    x7, x8 = upblock_fwd(p["ublock1"], x6, x5, x8, x7)
    x9, x10 = upblock_fwd(p["ublock2"], x8, x7, x4, x3)
    x11, x12 = upblock_fwd(p["ublock3"], x10, x9, x2, x1)
    out = _add_act([conv_apply(p["conv3"], x11), conv_apply(p["conv4"], x12)])
    return jnp.transpose(out, (0, 3, 1, 2))                    # back to NCHW


if __name__ == "__main__":
    key = jax.random.PRNGKey(0)
    kp, kx, kz, kr, kd, ku = jax.random.split(key, 6)
    params = init_pixelcnnpp(kp)

    # Module-level input in PyTorch's NCHW convention, converted to NHWC once
    # at the boundary (activations stay NHWC bf16 inside the fused kernels).
    x_nchw = jax.random.normal(kx, (2, 3, 16, 16), jnp.float32)
    x = jnp.transpose(x_nchw, (0, 2, 3, 1))

    outs = []
    # Stem convs of PixelCNNPP (these parts of the reference graph do run).
    outs.append(jax.jit(lambda a: conv_apply(params["conv1"], a))(x))   # (2, 15, 14, 32)
    outs.append(jax.jit(lambda a: conv_apply(params["conv2"], a))(x))   # (2, 16, 14, 32)

    # DownBlock / UpBlock / output heads exercised on shape-consistent inputs
    # (see TODO in pixelcnnpp_forward for why the verbatim wiring cannot run).
    z = jax.random.normal(kz, (2, 16, 16, 32), jnp.float32)
    rz = jax.random.normal(kr, (2, 16, 16, 32), jnp.float32)
    outs.extend(jax.jit(lambda a, b: downblock_fwd(params["dblock1"], a, b))(z, rz))

    d3 = jax.random.normal(kd, (2, 8, 8, 8), jnp.float32)
    outs.extend(jax.jit(
        lambda a, b: downblock_fwd(params["dblock3"], a, b, final=True))(d3, d3))

    u_in = jax.random.normal(ku, (2, 7, 7, 8), jnp.float32)
    outs.extend(jax.jit(
        lambda a: upblock_fwd(params["ublock1"], a, a, a, a))(u_in))    # (2, 15, 15, 16) x2

    y32 = jax.random.normal(kz, (2, 8, 10, 32), jnp.float32)
    outs.append(jax.jit(lambda a: conv_apply(params["conv3"], a))(y32))  # (2, 7, 8, 224)
    outs.append(jax.jit(lambda a: conv_apply(params["conv4"], a))(y32))  # (2, 8, 8, 224)

    for o in outs:
        jax.block_until_ready(o)
    print("KERNEL_OK")
</pallas_src>

<mosaic_0001>
module attributes {stable_mosaic.version = 11 : i64} {
  func.func @_conv_kernel(%arg0: i32, %arg1: i32, %arg2: memref<1x256x24xbf16, #tpu.memory_space<vmem>>, %arg3: memref<2x24x32xbf16, #tpu.memory_space<vmem>>, %arg4: memref<1x32xf32, #tpu.memory_space<vmem>>, %arg5: memref<1x32xf32, #tpu.memory_space<vmem>>, %arg6: memref<1x240x32xbf16, #tpu.memory_space<vmem>>) attributes {dimension_semantics = [#tpu.dimension_semantics<parallel>, #tpu.dimension_semantics<parallel>], iteration_bounds = array<i64: 2, 1>, scalar_prefetch = 0 : i64, scratch_operands = 0 : i64, tpu.core_type = #tpu.core_type<tc>, window_params = [{transform_indices = @transform_0, window_bounds = array<i64: 1, 256, 24>}, {pipeline_mode = #tpu.pipeline_mode<synchronous>, transform_indices = @transform_1, window_bounds = array<i64: 2, 24, 32>}, {pipeline_mode = #tpu.pipeline_mode<synchronous>, transform_indices = @transform_2, window_bounds = array<i64: 1, 32>}, {pipeline_mode = #tpu.pipeline_mode<synchronous>, transform_indices = @transform_3, window_bounds = array<i64: 1, 32>}, {transform_indices = @transform_4, window_bounds = array<i64: 1, 240, 32>}]} {
    %c240_i32 = arith.constant 240 : i32
    %0 = arith.muli %arg1, %c240_i32 : i32
    %1 = tpu.assume_multiple %0, 16 : i32
    %c0_i32 = arith.constant 0 : i32
    %2 = arith.addi %1, %c0_i32 : i32
    %c0 = arith.constant 0 : index
    %3 = arith.index_cast %2 : i32 to index
    %c0_0 = arith.constant 0 : index
    %4 = vector.load %arg2[%c0, %3, %c0_0] : memref<1x256x24xbf16, #tpu.memory_space<vmem>>, vector<1x240x24xbf16>
    %5 = vector.shape_cast %4 : vector<1x240x24xbf16> to vector<240x24xbf16>
    %c0_1 = arith.constant 0 : index
    %c0_2 = arith.constant 0 : index
    %c0_3 = arith.constant 0 : index
    %6 = vector.load %arg3[%c0_1, %c0_2, %c0_3] : memref<2x24x32xbf16, #tpu.memory_space<vmem>>, vector<1x24x32xbf16>
    %7 = vector.shape_cast %6 : vector<1x24x32xbf16> to vector<24x32xbf16>
    %cst = arith.constant dense<0.000000e+00> : vector<240x32xf32>
    %8 = tpu.matmul %5, %7, %cst {dimension_numbers = #tpu.dot_dimension_numbers<[1], [0], [0], [1], [0, 0, 1, 1], [], []>} : vector<240x24xbf16>, vector<24x32xbf16>, vector<240x32xf32> -> vector<240x32xf32>
    %c16_i32 = arith.constant 16 : i32
    %9 = arith.addi %1, %c16_i32 : i32
    %c0_4 = arith.constant 0 : index
    %10 = arith.index_cast %9 : i32 to index
    %c0_5 = arith.constant 0 : index
    %11 = vector.load %arg2[%c0_4, %10, %c0_5] : memref<1x256x24xbf16, #tpu.memory_space<vmem>>, vector<1x240x24xbf16>
    %12 = vector.shape_cast %11 : vector<1x240x24xbf16> to vector<240x24xbf16>
    %c1 = arith.constant 1 : index
    %c0_6 = arith.constant 0 : index
    %c0_7 = arith.constant 0 : index
    %13 = vector.load %arg3[%c1, %c0_6, %c0_7] : memref<2x24x32xbf16, #tpu.memory_space<vmem>>, vector<1x24x32xbf16>
    %14 = vector.shape_cast %13 : vector<1x24x32xbf16> to vector<24x32xbf16>
    %cst_8 = arith.constant dense<0.000000e+00> : vector<240x32xf32>
    %15 = tpu.matmul %12, %14, %cst_8 {dimension_numbers = #tpu.dot_dimension_numbers<[1], [0], [0], [1], [0, 0, 1, 1], [], []>} : vector<240x24xbf16>, vector<24x32xbf16>, vector<240x32xf32> -> vector<240x32xf32>
    %16 = arith.addf %8, %15 : vector<240x32xf32>
    %c0_9 = arith.constant 0 : index
    %c0_10 = arith.constant 0 : index
    %17 = vector.load %arg4[%c0_9, %c0_10] : memref<1x32xf32, #tpu.memory_space<vmem>>, vector<1x32xf32>
    %18 = vector.broadcast %17 : vector<1x32xf32> to vector<240x32xf32>
    %19 = arith.mulf %16, %18 : vector<240x32xf32>
    %c0_11 = arith.constant 0 : index
    %c0_12 = arith.constant 0 : index
    %20 = vector.load %arg5[%c0_11, %c0_12] : memref<1x32xf32, #tpu.memory_space<vmem>>, vector<1x32xf32>
    %21 = vector.broadcast %20 : vector<1x32xf32> to vector<240x32xf32>
    %22 = arith.addf %19, %21 : vector<240x32xf32>
    %23 = arith.truncf %22 : vector<240x32xf32> to vector<240x32xbf16>
    %c0_13 = arith.constant 0 : index
    %c0_14 = arith.constant 0 : index
    %c0_15 = arith.constant 0 : index
    %24 = vector.load %arg6[%c0_13, %c0_14, %c0_15] : memref<1x240x32xbf16, #tpu.memory_space<vmem>>, vector<1x240x32xbf16>
    %25 = vector.shape_cast %24 : vector<1x240x32xbf16> to vector<240x32xbf16>
    %26 = vector.shape_cast %23 : vector<240x32xbf16> to vector<1x240x32xbf16>
    tpu.vector_store %arg6[%c0_13, %c0_14, %c0_15], %26 {strides = array<i32>} : memref<1x240x32xbf16, #tpu.memory_space<vmem>>, vector<1x240x32xbf16>,
    return
  }
  func.func @transform_0(%arg0: i32, %arg1: i32) -> (i32, i32, i32) {
    %c0_i32 = arith.constant 0 : i32
    %c0_i32_0 = arith.constant 0 : i32
    %c0_i32_1 = arith.constant 0 : i32
    return %arg0, %c0_i32, %c0_i32_0 : i32, i32, i32
  }
  func.func @transform_1(%arg0: i32, %arg1: i32) -> (i32, i32, i32) {
    %c0_i32 = arith.constant 0 : i32
    %c0_i32_0 = arith.constant 0 : i32
    %c0_i32_1 = arith.constant 0 : i32
    %c0_i32_2 = arith.constant 0 : i32
    return %c0_i32, %c0_i32_0, %c0_i32_1 : i32, i32, i32
  }
  func.func @transform_2(%arg0: i32, %arg1: i32) -> (i32, i32) {
    %c0_i32 = arith.constant 0 : i32
    %c0_i32_0 = arith.constant 0 : i32
    %c0_i32_1 = arith.constant 0 : i32
    return %c0_i32, %c0_i32_0 : i32, i32
  }
  func.func @transform_3(%arg0: i32, %arg1: i32) -> (i32, i32) {
    %c0_i32 = arith.constant 0 : i32
    %c0_i32_0 = arith.constant 0 : i32
    %c0_i32_1 = arith.constant 0 : i32
    return %c0_i32, %c0_i32_0 : i32, i32
  }
  func.func @transform_4(%arg0: i32, %arg1: i32) -> (i32, i32, i32) {
    %c0_i32 = arith.constant 0 : i32
    %c0_i32_0 = arith.constant 0 : i32
    return %arg0, %arg1, %c0_i32 : i32, i32, i32
  }
}

</mosaic_0001>

<llo_original>
// kernel: _lambda_.1
$region0: #{_lambda_.1}
  #allocation0 [shape = 'u32[]', space=smem, size = 0x4, offset = 0x4, fixed_abs, tag = 'smem constant byte address 0x4 - core index']
  #allocation1 [shape = 'u32[144,128]{1,0:T(1,128)}', space=vmem, size = 0x12000, scoped, tag = 'internal scratch']
  %s0 = inlined_call_operand.vmem [shape: bf16[2,256,24], index: 0, kind: input, shape index: {}]
  %s1 = inlined_call_operand.vmem [shape: bf16[2,24,32], index: 1, kind: input, shape index: {}]
  %s2 = inlined_call_operand.vmem [shape: f32[1,32], index: 2, kind: input, shape index: {}]
  %s3 = inlined_call_operand.vmem [shape: f32[1,32], index: 3, kind: input, shape index: {}]
  %s4 = inlined_call_operand.vmem [shape: bf16[2,240,32], index: 4, kind: output, shape index: {}]
  %s5 = sld [smem:[#allocation0]]
  $region49: #{_lambda_.1} parent=0
    _
  %s7 = ssub.s32 1, %s5
  %s8 = scalar_select 0, %s7, %s5
  loop: start=0, step=1, limit=4
  $region2: #{_lambda_.1} parent=0 // loop_pre_header
    _
  $region3: #{_lambda_.1} parent=0 // loop_header
    %s10 = sphi 0, %s14
    %p11 = scmp.ge.s32.totalorder %s10, 4
    %s17 = sphi 0, %s29
    %s18 = sphi 0, %s25
    %s19 = sphi 0, %s17
    %s20 = sphi 0, %s18
    %s21 = sphi 0, %s19
    %s22 = sphi 0, %s20
    %s32 = sphi 0, %s34
    %s35 = sphi 0, %s32
    %s36 = sphi 0, %s35
    %s52 = sphi 0, %s36
    %s56 = sphi 0, %s56
    %s58 = sphi 0, %s56
    %s59 = sphi 0, %s58
    %s73 = sphi 0, %s59
    %s77 = sphi 0, %s77
    %s79 = sphi 0, %s77
    %s80 = sphi 0, %s79
    %s94 = sphi 0, %s80
    %s98 = sphi 0, %s98
    %s100 = sphi 0, %s98
    %s101 = sphi 0, %s100
    %s115 = sphi 0, %s101
    %s123 = sphi 0, %s125
    %s126 = sphi 0, %s123
    %s127 = sphi 0, %s126
    %s143 = sphi 0, %s127
  $region4: #{_lambda_.1} parent=0 // loop_header_branch
    %13 = sbr.rel (%p11) target = $region8
  $region5: #{_lambda_.1} parent=0 // loop_body
    %s15 = ssub.s32 %s10, 1
    %s16 = ssub.s32 %s10, 2
    %s23 = sadd.s32 1, %s18
    %p24 = scmp.ge.s32.totalorder %s23, 1
    %s25 = scalar_select %p24, 0, %s23
    %s26 = sadd.s32 1, %s17
    %s27 = scalar_select %p24, %s26, %s17
    %p28 = scmp.ge.s32.totalorder %s27, 2
    %s29 = scalar_select %p28, 0, %s27
    %s30 = ssub.s32 %s17, %s29
    %p31 = scmp.eq.s32.totalorder %s30, 0
    %s33 = sadd.s32 %s32, 1
    %s34 = scalar_select %p31, %s32, %s33
    %p37 = pneg %p31
    %p38 = scmp.eq.s32.totalorder %s10, 1
    %p39 = por %p37, %p38
    %p40 = scmp.ne.s32.totalorder %s32, %s35
    %p41 = scmp.eq.s32.totalorder %s10, 0
    %p42 = por %p40, %p41
    %p43 = scmp.ne.s32.totalorder %s32, %s35
    %p44 = scmp.eq.s32.totalorder %s15, 1
    %p45 = por %p43, %p44
    %p46 = scmp.ne.s32.totalorder %s35, %s36
    %p47 = scmp.eq.s32.totalorder %s15, 0
    %p48 = por %p46, %p47
    %p49 = scmp.ne.s32.totalorder %s35, %s36
    %p50 = scmp.eq.s32.totalorder %s16, 1
    %p51 = por %p49, %p50
    %p53 = scmp.ne.s32.totalorder %s36, %s52
    %p54 = scmp.eq.s32.totalorder %s16, 0
    %p55 = por %p53, %p54
    %s57 = sadd.s32 %s56, 1
    %p60 = scmp.eq.s32.totalorder %s10, 1
    %p61 = scmp.ne.s32.totalorder %s56, %s58
    %p62 = scmp.eq.s32.totalorder %s10, 0
    %p63 = por %p61, %p62
    %p64 = scmp.ne.s32.totalorder %s56, %s58
    %p65 = scmp.eq.s32.totalorder %s15, 1
    %p66 = por %p64, %p65
    %p67 = scmp.ne.s32.totalorder %s58, %s59
    %p68 = scmp.eq.s32.totalorder %s15, 0
    %p69 = por %p67, %p68
    %p70 = scmp.ne.s32.totalorder %s58, %s59
    %p71 = scmp.eq.s32.totalorder %s16, 1
    %p72 = por %p70, %p71
    %p74 = scmp.ne.s32.totalorder %s59, %s73
    %p75 = scmp.eq.s32.totalorder %s16, 0
    %p76 = por %p74, %p75
    %s78 = sadd.s32 %s77, 1
    %p81 = scmp.eq.s32.totalorder %s10, 1
    %p82 = scmp.ne.s32.totalorder %s77, %s79
    %p83 = scmp.eq.s32.totalorder %s10, 0
    %p84 = por %p82, %p83
    %p85 = scmp.ne.s32.totalorder %s77, %s79
    %p86 = scmp.eq.s32.totalorder %s15, 1
    %p87 = por %p85, %p86
    %p88 = scmp.ne.s32.totalorder %s79, %s80
    %p89 = scmp.eq.s32.totalorder %s15, 0
    %p90 = por %p88, %p89
    %p91 = scmp.ne.s32.totalorder %s79, %s80
    %p92 = scmp.eq.s32.totalorder %s16, 1
    %p93 = por %p91, %p92
    %p95 = scmp.ne.s32.totalorder %s80, %s94
    %p96 = scmp.eq.s32.totalorder %s16, 0
    %p97 = por %p95, %p96
    %s99 = sadd.s32 %s98, 1
    %p102 = scmp.eq.s32.totalorder %s10, 1
    %p103 = scmp.ne.s32.totalorder %s98, %s100
    %p104 = scmp.eq.s32.totalorder %s10, 0
    %p105 = por %p103, %p104
    %p106 = scmp.ne.s32.totalorder %s98, %s100
    %p107 = scmp.eq.s32.totalorder %s15, 1
    %p108 = por %p106, %p107
    %p109 = scmp.ne.s32.totalorder %s100, %s101
    %p110 = scmp.eq.s32.totalorder %s15, 0
    %p111 = por %p109, %p110
    %p112 = scmp.ne.s32.totalorder %s100, %s101
    %p113 = scmp.eq.s32.totalorder %s16, 1
    %p114 = por %p112, %p113
    %p116 = scmp.ne.s32.totalorder %s101, %s115
    %p117 = scmp.eq.s32.totalorder %s16, 0
    %p118 = por %p116, %p117
    %s119 = ssub.s32 %s17, %s29
    %s120 = ssub.s32 %s18, %s25
    %s121 = sor.u32 %s119, %s120
    %p122 = scmp.eq.s32.totalorder %s121, 0
    %s124 = sadd.s32 %s123, 1
    %s125 = scalar_select %p122, %s123, %s124
    %p128 = pneg %p122
    %p129 = scmp.eq.s32.totalorder %s10, 1
    %p130 = por %p128, %p129
    %p131 = scmp.ne.s32.totalorder %s123, %s126
    %p132 = scmp.eq.s32.totalorder %s10, 0
    %p133 = por %p131, %p132
    %p134 = scmp.ne.s32.totalorder %s123, %s126
    %p135 = scmp.eq.s32.totalorder %s15, 1
    %p136 = por %p134, %p135
    %p137 = scmp.ne.s32.totalorder %s126, %s127
    %p138 = scmp.eq.s32.totalorder %s15, 0
    %p139 = por %p137, %p138
    %p140 = scmp.ne.s32.totalorder %s126, %s127
    %p141 = scmp.eq.s32.totalorder %s16, 1
    %p142 = por %p140, %p141
    %p144 = scmp.ne.s32.totalorder %s127, %s143
    %p145 = scmp.eq.s32.totalorder %s16, 0
    %p146 = por %p144, %p145
    %p147 = scmp.le.s32.totalorder 1, %s10
    %p148 = scmp.lt.s32.totalorder %s10, 3
    %p149 = pnand %p147, %p148
    %p150 = pneg %p149
    // Predicated region
    $region9: #{_lambda_.1} parent=5 // pred_check
      _
    $region10: #{_lambda_.1} parent=5 // pred_check_branch
      %152 = sbr.rel (%p149) target = $region12
    $region11: #{_lambda_.1} parent=5 // pred_region
      %s153 = ssub.s32 %s10, 1
      // Predicated region
      $region13: #{_lambda_.1} parent=11 // pred_check
        %p154 = pneg %p69
      $region14: #{_lambda_.1} parent=11 // pred_check_branch
        %156 = sbr.rel (%p154) target = $region16
      $region15: #{_lambda_.1} parent=11 // pred_region
        _
      $region16: #{_lambda_.1} parent=11 // pred_fallthru
        _
      // Predicated region
      $region17: #{_lambda_.1} parent=11 // pred_check
        %p157 = pneg %p90
      $region18: #{_lambda_.1} parent=11 // pred_check_branch
        %159 = sbr.rel (%p157) target = $region20
      $region19: #{_lambda_.1} parent=11 // pred_region
        _
      $region20: #{_lambda_.1} parent=11 // pred_fallthru
        _
      // Predicated region
      $region21: #{_lambda_.1} parent=11 // pred_check
        %p160 = pneg %p111
      $region22: #{_lambda_.1} parent=11 // pred_check_branch
        %162 = sbr.rel (%p160) target = $region24
      $region23: #{_lambda_.1} parent=11 // pred_region
        _
      $region24: #{_lambda_.1} parent=11 // pred_fallthru
        _
    $region12: #{_lambda_.1} parent=5 // pred_fallthru
      _
    %p163 = scmp.lt.s32.totalorder %s10, 2
    // Predicated region
    $region25: #{_lambda_.1} parent=5 // pred_check
      %p164 = pneg %p163
    $region26: #{_lambda_.1} parent=5 // pred_check_branch
      %166 = sbr.rel (%p164) target = $region28
    $region27: #{_lambda_.1} parent=5 // pred_region
      // Predicated region
      $region29: #{_lambda_.1} parent=27 // pred_check
        %p167 = pneg %p42
      $region30: #{_lambda_.1} parent=27 // pred_check_branch
        %169 = sbr.rel (%p167) target = $region32
      $region31: #{_lambda_.1} parent=27 // pred_region
        %p170 = scmp.lt.s32.totalorder %s17, 1
        %s171 = scalar_select %p170, %s17, 1
        %s172 = smul.addr %s171, 32
        %s173 = smul.addr %s172, 4
        %s174 = scalar_lea.vmem %s0, %s173
      $region32: #{_lambda_.1} parent=27 // pred_fallthru
        _
    $region28: #{_lambda_.1} parent=5 // pred_fallthru
      _
    %p175 = scmp.le.s32.totalorder 1, %s10
    %p176 = scmp.lt.s32.totalorder %s10, 3
    %p177 = pnand %p175, %p176
    %p178 = pneg %p177
    // Predicated region
    $region33: #{_lambda_.1} parent=5 // pred_check
      _
    $region34: #{_lambda_.1} parent=5 // pred_check_branch
      %180 = sbr.rel (%p177) target = $region36
    $region35: #{_lambda_.1} parent=5 // pred_region
      %s181 = ssub.s32 %s10, 1
      %p182 = scmp.lt.s32.totalorder %s19, 1
      %s183 = scalar_select %p182, %s19, 1
      %s184 = smul.addr %s183, 32
      %s185 = smul.addr %s184, 4
      %s186 = scalar_lea.vmem %s0, %s185
      %p187 = pneg %p48
      %p188 = pneg %p45
      %p189 = pneg %p69
      %p190 = pneg %p66
      %p191 = pneg %p90
      %p192 = pneg %p87
      %p193 = pneg %p111
      %p194 = pneg %p108
      %p195 = pneg %p139
      %p196 = pneg %p136
      %s197 = smul.u32 30, %s20
      %p198 = scmp.lt.s32.totalorder %s19, 1
      %s199 = scalar_select %p198, %s19, 1
      %p200 = scmp.lt.s32.totalorder %s197, 29
      %s201 = scalar_select %p200, %s197, 29
      %s202 = smul.addr %s199, 30
      %s203 = sadd.s32 %s201, %s202
      %s204 = smul.addr %s203, 4
      %s205 = scalar_lea.vmem %s4, %s204
      %p206 = scmp.lt.s32.totalorder %s19, 1
      %s207 = scalar_select %p206, %s19, 1
      %s208 = smul.addr %s207, 32
      %s209 = smul.addr %s208, 4
      %s210 = scalar_lea.vmem %s0, %s209
      %s211 = smul.u32 30, %s20
      %p212 = scmp.lt.s32.totalorder %s19, 1
      %s213 = scalar_select %p212, %s19, 1
      %p214 = scmp.lt.s32.totalorder %s211, 29
      %s215 = scalar_select %p214, %s211, 29
      %s216 = smul.addr %s213, 30
      %s217 = sadd.s32 %s215, %s216
      %s218 = smul.addr %s217, 4
      %s219 = scalar_lea.vmem %s4, %s218
      %s220 = smul.u32 30, %s20
      %s222 = smul.u32 %s20, 240
      %s223 = sshra.s32 %s222, 3
      %s224 = sand.u32 %s222, 7
      %s225 = smul.addr %s223, 4
      %s226 = scalar_lea.vmem %s210, %s225
      %v227 = vld [vmem:[%s226] sm:$0xf]
      %v228 = vld [vmem:[%s226 + $0x4] sm:$0xf]
      %v229 = vld [vmem:[%s226 + $0x8] sm:$0xf]
      %v230 = vld [vmem:[%s226 + $0xc] sm:$0xf]
      %v231 = vld [vmem:[%s226 + $0x10] sm:$0xf]
      %v232 = vld [vmem:[%s226 + $0x14] sm:$0xf]
      %v233 = vld [vmem:[%s226 + $0x18] sm:$0xf]
      %v234 = vld [vmem:[%s226 + $0x1c] sm:$0xf]
      %v235 = vld [vmem:[%s226 + $0x20] sm:$0xf]
      %v236 = vld [vmem:[%s226 + $0x24] sm:$0xf]
      %v237 = vld [vmem:[%s226 + $0x28] sm:$0xf]
      %v238 = vld [vmem:[%s226 + $0x2c] sm:$0xf]
      %v239 = vld [vmem:[%s226 + $0x30] sm:$0xf]
      %v240 = vld [vmem:[%s226 + $0x34] sm:$0xf]
      %v241 = vld [vmem:[%s226 + $0x38] sm:$0xf]
      %v242 = vld [vmem:[%s226 + $0x3c] sm:$0xf]
      %v243 = vld [vmem:[%s226 + $0x40] sm:$0xf]
      %v244 = vld [vmem:[%s226 + $0x44] sm:$0xf]
      %v245 = vld [vmem:[%s226 + $0x48] sm:$0xf]
      %v246 = vld [vmem:[%s226 + $0x4c] sm:$0xf]
      %v247 = vld [vmem:[%s226 + $0x50] sm:$0xf]
      %v248 = vld [vmem:[%s226 + $0x54] sm:$0xf]
      %v249 = vld [vmem:[%s226 + $0x58] sm:$0xf]
      %v250 = vld [vmem:[%s226 + $0x5c] sm:$0xf]
      %v251 = vld [vmem:[%s226 + $0x60] sm:$0xf]
      %v252 = vld [vmem:[%s226 + $0x64] sm:$0xf]
      %v253 = vld [vmem:[%s226 + $0x68] sm:$0xf]
      %v254 = vld [vmem:[%s226 + $0x6c] sm:$0xf]
      %v255 = vld [vmem:[%s226 + $0x70] sm:$0xf]
      %v256 = vld [vmem:[%s226 + $0x74] sm:$0xf]
      %v257 = vld [vmem:[%s1] sm:$0xf]
      %v258 = vld [vmem:[%s1 + $0x4] sm:$0xf]
      %v259 = vld [vmem:[%s1 + $0x8] sm:$0xf]
      %s260 = sadd.s32 %s222, 16
      %s261 = sshra.s32 %s260, 3
      %s262 = sand.u32 %s260, 7
      %s263 = smul.addr %s261, 4
      %s264 = scalar_lea.vmem %s210, %s263
      %v265 = vld [vmem:[%s264] sm:$0xf]
      %v266 = vld [vmem:[%s264 + $0x4] sm:$0xf]
      %v267 = vld [vmem:[%s264 + $0x8] sm:$0xf]
      %v268 = vld [vmem:[%s264 + $0xc] sm:$0xf]
      %v269 = vld [vmem:[%s264 + $0x10] sm:$0xf]
      %v270 = vld [vmem:[%s264 + $0x14] sm:$0xf]
      %v271 = vld [vmem:[%s264 + $0x18] sm:$0xf]
      %v272 = vld [vmem:[%s264 + $0x1c] sm:$0xf]
      %v273 = vld [vmem:[%s264 + $0x20] sm:$0xf]
      %v274 = vld [vmem:[%s264 + $0x24] sm:$0xf]
      %v275 = vld [vmem:[%s264 + $0x28] sm:$0xf]
      %v276 = vld [vmem:[%s264 + $0x2c] sm:$0xf]
      %v277 = vld [vmem:[%s264 + $0x30] sm:$0xf]
      %v278 = vld [vmem:[%s264 + $0x34] sm:$0xf]
      %v279 = vld [vmem:[%s264 + $0x38] sm:$0xf]
      %v280 = vld [vmem:[%s264 + $0x3c] sm:$0xf]
      %v281 = vld [vmem:[%s264 + $0x40] sm:$0xf]
      %v282 = vld [vmem:[%s264 + $0x44] sm:$0xf]
      %v283 = vld [vmem:[%s264 + $0x48] sm:$0xf]
      %v284 = vld [vmem:[%s264 + $0x4c] sm:$0xf]
      %v285 = vld [vmem:[%s264 + $0x50] sm:$0xf]
      %v286 = vld [vmem:[%s264 + $0x54] sm:$0xf]
      %v287 = vld [vmem:[%s264 + $0x58] sm:$0xf]
      %v288 = vld [vmem:[%s264 + $0x5c] sm:$0xf]
      %v289 = vld [vmem:[%s264 + $0x60] sm:$0xf]
      %v290 = vld [vmem:[%s264 + $0x64] sm:$0xf]
      %v291 = vld [vmem:[%s264 + $0x68] sm:$0xf]
      %v292 = vld [vmem:[%s264 + $0x6c] sm:$0xf]
      %v293 = vld [vmem:[%s264 + $0x70] sm:$0xf]
      %v294 = vld [vmem:[%s264 + $0x74] sm:$0xf]
      %s295 = scalar_lea.vmem %s1, 12
      %v296 = vld [vmem:[%s295] sm:$0xf]
      %v297 = vld [vmem:[%s295 + $0x4] sm:$0xf]
      %v298 = vld [vmem:[%s295 + $0x8] sm:$0xf]
      %v329 = vunpack.c.l.b16 %v265
      %v330 = vunpack.c.l.b16 %v266
      %v331 = vunpack.c.l.b16 %v267
      %v332 = vunpack.c.l.b16 %v268
      %v333 = vunpack.c.l.b16 %v269
      %v334 = vunpack.c.l.b16 %v270
      %v335 = vunpack.c.l.b16 %v271
      %v336 = vunpack.c.l.b16 %v272
      %v337 = vunpack.c.l.b16 %v273
      %v338 = vunpack.c.l.b16 %v274
      %v339 = vunpack.c.l.b16 %v275
      %v340 = vunpack.c.l.b16 %v276
      %v341 = vunpack.c.l.b16 %v277
      %v342 = vunpack.c.l.b16 %v278
      %v343 = vunpack.c.l.b16 %v279
      %v344 = vunpack.c.l.b16 %v280
      %v345 = vunpack.c.l.b16 %v281
      %v346 = vunpack.c.l.b16 %v282
      %v347 = vunpack.c.l.b16 %v283
      %v348 = vunpack.c.l.b16 %v284
      %v349 = vunpack.c.l.b16 %v285
      %v350 = vunpack.c.l.b16 %v286
      %v351 = vunpack.c.l.b16 %v287
      %v352 = vunpack.c.l.b16 %v288
      %v353 = vunpack.c.l.b16 %v289
      %v354 = vunpack.c.l.b16 %v290
      %v355 = vunpack.c.l.b16 %v291
      %v356 = vunpack.c.l.b16 %v292
      %v357 = vunpack.c.l.b16 %v293
      %v358 = vunpack.c.l.b16 %v294
      %v359 = vpack.c.b16 %v330, %v329
      %v360 = vpack.c.b16 %v332, %v331
      %v361 = vpack.c.b16 %v334, %v333
      %v362 = vpack.c.b16 %v336, %v335
      %v363 = vpack.c.b16 %v338, %v337
      %v364 = vpack.c.b16 %v340, %v339
      %v365 = vpack.c.b16 %v342, %v341
      %v366 = vpack.c.b16 %v344, %v343
      %v367 = vpack.c.b16 %v346, %v345
      %v368 = vpack.c.b16 %v348, %v347
      %v369 = vpack.c.b16 %v350, %v349
      %v370 = vpack.c.b16 %v352, %v351
      %v371 = vpack.c.b16 %v354, %v353
      %v372 = vpack.c.b16 %v356, %v355
      %v373 = vpack.c.b16 %v358, %v357
      %v377 = vunpack.c.l.b16 %v296
      %v378 = vunpack.c.l.b16 %v297
      %v379 = vunpack.c.l.b16 %v298
      %v380 = vpack.c.b16 %v378, %v377
      %v381 = vpack.c.b16 %v379, %v379
      %vm383 = vcmask 195584
      %v385 = vsel %vm383, %v359, 0
      %v388 = vsel %vm383, %v360, 0
      %v391 = vsel %vm383, %v361, 0
      %v394 = vsel %vm383, %v362, 0
      %v397 = vsel %vm383, %v363, 0
      %v400 = vsel %vm383, %v364, 0
      %v403 = vsel %vm383, %v365, 0
      %v406 = vsel %vm383, %v366, 0
      %v409 = vsel %vm383, %v367, 0
      %v412 = vsel %vm383, %v368, 0
      %v415 = vsel %vm383, %v369, 0
      %v418 = vsel %vm383, %v370, 0
      %v421 = vsel %vm383, %v371, 0
      %v424 = vsel %vm383, %v372, 0
      %v427 = vsel %vm383, %v373, 0
      %vm429 = vcmask 1043456
      %v431 = vsel %vm429, %v381, 0
      %433 = vmatprep.subr.bf16.mxu0 0
      %434 = vmatpush1.bf16.msra.mxu0 0
      %435 = vmatprep.subr.bf16.mxu0 0
      %436 = vmatpush1.bf16.msra.mxu0 0
      %437 = vmatprep.subr.bf16.mxu0 0
      %438 = vmatpush1.bf16.msra.mxu0 0
      %439 = vmatprep.subr.bf16.mxu0 0
      %440 = vmatpush1.bf16.msra.mxu0 0
      %441 = vmatprep.subr.bf16.mxu0 0
      %442 = vmatpush1.bf16.msra.mxu0 0
      %443 = vmatprep.subr.bf16.mxu0 0
      %444 = vmatpush1.bf16.msra.mxu0 0
      %445 = vmatprep.subr.bf16.mxu0 0
      %446 = vmatpush1.bf16.msra.mxu0 %v431
      %447 = vmatprep.subr.bf16.mxu0 0
      %448 = vmatpush1.bf16.msra.mxu0 %v380
      %449 = vmatprep.subr.bf16.mxu0 0
      %450 = vmatpush2.bf16.msra.mxu0 0
      %451 = vmatprep.subr.bf16.mxu0 0
      %452 = vmatpush2.bf16.msra.mxu0 0
      %453 = vmatprep.subr.bf16.mxu0 0
      %454 = vmatpush2.bf16.msra.mxu0 0
      %455 = vmatprep.subr.bf16.mxu0 0
      %456 = vmatpush2.bf16.msra.mxu0 0
      %457 = vmatprep.subr.bf16.mxu0 0
      %458 = vmatpush2.bf16.msra.mxu0 0
      %459 = vmatprep.subr.bf16.mxu0 0
      %460 = vmatpush2.bf16.msra.mxu0 0
      %461 = vmatprep.subr.bf16.mxu0 0
      %462 = vmatpush2.bf16.msra.mxu0 0
      %463 = vmatprep.subr.bf16.mxu0 0
      %464 = vmatpush2.bf16.msra.mxu0 0
      %465 = vmatprep.mubr.bf16.mxu0 0
      %466 = vmatmul.mubr.bf16.gmra.mxu0 %v385
      %v467 = vpop.f32.mrf.mxu0
      %v468 = vadd.f32 0.0, %v467
      %v469 = vpop.f32.mrf.mxu0
      %v470 = vpop.f32.mrf.mxu0
      %v471 = vadd.f32 0.0, %v470
      %v472 = vpop.f32.mrf.mxu0
      %473 = vmatprep.mubr.bf16.mxu0 0
      %474 = vmatmul.mubr.bf16.gmra.mxu0 %v388
      %v475 = vpop.f32.mrf.mxu0
      %v476 = vadd.f32 0.0, %v475
      %v477 = vpop.f32.mrf.mxu0
      %v478 = vpop.f32.mrf.mxu0
      %v479 = vadd.f32 0.0, %v478
      %v480 = vpop.f32.mrf.mxu0
      %481 = vmatprep.mubr.bf16.mxu0 0
      %482 = vmatmul.mubr.bf16.gmra.mxu0 %v391
      %v483 = vpop.f32.mrf.mxu0
      %v484 = vadd.f32 0.0, %v483
      %v485 = vpop.f32.mrf.mxu0
      %v486 = vpop.f32.mrf.mxu0
      %v487 = vadd.f32 0.0, %v486
      %v488 = vpop.f32.mrf.mxu0
      %489 = vmatprep.mubr.bf16.mxu0 0
      %490 = vmatmul.mubr.bf16.gmra.mxu0 %v394
      %v491 = vpop.f32.mrf.mxu0
      %v492 = vadd.f32 0.0, %v491
      %v493 = vpop.f32.mrf.mxu0
      %v494 = vpop.f32.mrf.mxu0
      %v495 = vadd.f32 0.0, %v494
      %v496 = vpop.f32.mrf.mxu0
      %497 = vmatprep.mubr.bf16.mxu0 0
      %498 = vmatmul.mubr.bf16.gmra.mxu0 %v397
      %v499 = vpop.f32.mrf.mxu0
      %v500 = vadd.f32 0.0, %v499
      %v501 = vpop.f32.mrf.mxu0
      %v502 = vpop.f32.mrf.mxu0
      %v503 = vadd.f32 0.0, %v502
      %v504 = vpop.f32.mrf.mxu0
      %505 = vmatprep.mubr.bf16.mxu0 0
      %506 = vmatmul.mubr.bf16.gmra.mxu0 %v400
      %v507 = vpop.f32.mrf.mxu0
      %v508 = vadd.f32 0.0, %v507
      %v509 = vpop.f32.mrf.mxu0
      %v510 = vpop.f32.mrf.mxu0
      %v511 = vadd.f32 0.0, %v510
      %v512 = vpop.f32.mrf.mxu0
      %513 = vmatprep.mubr.bf16.mxu0 0
      %514 = vmatmul.mubr.bf16.gmra.mxu0 %v403
      %v515 = vpop.f32.mrf.mxu0
      %v516 = vadd.f32 0.0, %v515
      %v517 = vpop.f32.mrf.mxu0
      %v518 = vpop.f32.mrf.mxu0
      %v519 = vadd.f32 0.0, %v518
      %v520 = vpop.f32.mrf.mxu0
      %521 = vmatprep.mubr.bf16.mxu0 0
      %522 = vmatmul.mubr.bf16.gmra.mxu0 %v406
      %v523 = vpop.f32.mrf.mxu0
      %v524 = vadd.f32 0.0, %v523
      %v525 = vpop.f32.mrf.mxu0
      %v526 = vpop.f32.mrf.mxu0
      %v527 = vadd.f32 0.0, %v526
      %v528 = vpop.f32.mrf.mxu0
      %529 = vmatprep.mubr.bf16.mxu0 0
      %530 = vmatmul.mubr.bf16.gmra.mxu0 %v409
      %v531 = vpop.f32.mrf.mxu0
      %v532 = vadd.f32 0.0, %v531
      %v533 = vpop.f32.mrf.mxu0
      %v534 = vpop.f32.mrf.mxu0
      %v535 = vadd.f32 0.0, %v534
      %v536 = vpop.f32.mrf.mxu0
      %537 = vmatprep.mubr.bf16.mxu0 0
      %538 = vmatmul.mubr.bf16.gmra.mxu0 %v412
      %v539 = vpop.f32.mrf.mxu0
      %v540 = vadd.f32 0.0, %v539
      %v541 = vpop.f32.mrf.mxu0
      %v542 = vpop.f32.mrf.mxu0
      %v543 = vadd.f32 0.0, %v542
      %v544 = vpop.f32.mrf.mxu0
      %545 = vmatprep.mubr.bf16.mxu0 0
      %546 = vmatmul.mubr.bf16.gmra.mxu0 %v415
      %v547 = vpop.f32.mrf.mxu0
      %v548 = vadd.f32 0.0, %v547
      %v549 = vpop.f32.mrf.mxu0
      %v550 = vpop.f32.mrf.mxu0
      %v551 = vadd.f32 0.0, %v550
      %v552 = vpop.f32.mrf.mxu0
      %553 = vmatprep.mubr.bf16.mxu0 0
      %554 = vmatmul.mubr.bf16.gmra.mxu0 %v418
      %v555 = vpop.f32.mrf.mxu0
      %v556 = vadd.f32 0.0, %v555
      %v557 = vpop.f32.mrf.mxu0
      %v558 = vpop.f32.mrf.mxu0
      %v559 = vadd.f32 0.0, %v558
      %v560 = vpop.f32.mrf.mxu0
      %561 = vmatprep.mubr.bf16.mxu0 0
      %562 = vmatmul.mubr.bf16.gmra.mxu0 %v421
      %v563 = vpop.f32.mrf.mxu0
      %v564 = vadd.f32 0.0, %v563
      %v565 = vpop.f32.mrf.mxu0
      %v566 = vpop.f32.mrf.mxu0
      %v567 = vadd.f32 0.0, %v566
      %v568 = vpop.f32.mrf.mxu0
      %569 = vmatprep.mubr.bf16.mxu0 0
      %570 = vmatmul.mubr.bf16.gmra.mxu0 %v424
      %v571 = vpop.f32.mrf.mxu0
      %v572 = vadd.f32 0.0, %v571
      %v573 = vpop.f32.mrf.mxu0
      %v574 = vpop.f32.mrf.mxu0
      %v575 = vadd.f32 0.0, %v574
      %v576 = vpop.f32.mrf.mxu0
      %577 = vmatprep.mubr.bf16.mxu0 0
      %578 = vmatmul.mubr.bf16.gmra.mxu0 %v427
      %v579 = vpop.f32.mrf.mxu0
      %v580 = vadd.f32 0.0, %v579
      %v581 = vpop.f32.mrf.mxu0
      %v582 = vpop.f32.mrf.mxu0
      %v583 = vadd.f32 0.0, %v582
      %v584 = vpop.f32.mrf.mxu0
      %585 = vdwg.mxu0
      %v616 = vunpack.c.l.b16 %v227
      %v617 = vunpack.c.l.b16 %v228
      %v618 = vunpack.c.l.b16 %v229
      %v619 = vunpack.c.l.b16 %v230
      %v620 = vunpack.c.l.b16 %v231
      %v621 = vunpack.c.l.b16 %v232
      %v622 = vunpack.c.l.b16 %v233
      %v623 = vunpack.c.l.b16 %v234
      %v624 = vunpack.c.l.b16 %v235
      %v625 = vunpack.c.l.b16 %v236
      %v626 = vunpack.c.l.b16 %v237
      %v627 = vunpack.c.l.b16 %v238
      %v628 = vunpack.c.l.b16 %v239
      %v629 = vunpack.c.l.b16 %v240
      %v630 = vunpack.c.l.b16 %v241
      %v631 = vunpack.c.l.b16 %v242
      %v632 = vunpack.c.l.b16 %v243
      %v633 = vunpack.c.l.b16 %v244
      %v634 = vunpack.c.l.b16 %v245
      %v635 = vunpack.c.l.b16 %v246
      %v636 = vunpack.c.l.b16 %v247
      %v637 = vunpack.c.l.b16 %v248
      %v638 = vunpack.c.l.b16 %v249
      %v639 = vunpack.c.l.b16 %v250
      %v640 = vunpack.c.l.b16 %v251
      %v641 = vunpack.c.l.b16 %v252
      %v642 = vunpack.c.l.b16 %v253
      %v643 = vunpack.c.l.b16 %v254
      %v644 = vunpack.c.l.b16 %v255
      %v645 = vunpack.c.l.b16 %v256
      %v646 = vpack.c.b16 %v617, %v616
      %v647 = vpack.c.b16 %v619, %v618
      %v648 = vpack.c.b16 %v621, %v620
      %v649 = vpack.c.b16 %v623, %v622
      %v650 = vpack.c.b16 %v625, %v624
      %v651 = vpack.c.b16 %v627, %v626
      %v652 = vpack.c.b16 %v629, %v628
      %v653 = vpack.c.b16 %v631, %v630
      %v654 = vpack.c.b16 %v633, %v632
      %v655 = vpack.c.b16 %v635, %v634
      %v656 = vpack.c.b16 %v637, %v636
      %v657 = vpack.c.b16 %v639, %v638
      %v658 = vpack.c.b16 %v641, %v640
      %v659 = vpack.c.b16 %v643, %v642
      %v660 = vpack.c.b16 %v645, %v644
      %v664 = vunpack.c.l.b16 %v257
      %v665 = vunpack.c.l.b16 %v258
      %v666 = vunpack.c.l.b16 %v259
      %v667 = vpack.c.b16 %v665, %v664
      %v668 = vpack.c.b16 %v666, %v666
      %v671 = vsel %vm383, %v646, 0
      %v674 = vsel %vm383, %v647, 0
      %v677 = vsel %vm383, %v648, 0
      %v680 = vsel %vm383, %v649, 0
      %v683 = vsel %vm383, %v650, 0
      %v686 = vsel %vm383, %v651, 0
      %v689 = vsel %vm383, %v652, 0
      %v692 = vsel %vm383, %v653, 0
      %v695 = vsel %vm383, %v654, 0
      %v698 = vsel %vm383, %v655, 0
      %v701 = vsel %vm383, %v656, 0
      %v704 = vsel %vm383, %v657, 0
      %v707 = vsel %vm383, %v658, 0
      %v710 = vsel %vm383, %v659, 0
      %v713 = vsel %vm383, %v660, 0
      %v716 = vsel %vm429, %v668, 0
      %718 = vmatprep.subr.bf16.mxu0 0
      %719 = vmatpush1.bf16.msra.mxu0 0
      %720 = vmatprep.subr.bf16.mxu0 0
      %721 = vmatpush1.bf16.msra.mxu0 0
      %722 = vmatprep.subr.bf16.mxu0 0
      %723 = vmatpush1.bf16.msra.mxu0 0
      %724 = vmatprep.subr.bf16.mxu0 0
      %725 = vmatpush1.bf16.msra.mxu0 0
      %726 = vmatprep.subr.bf16.mxu0 0
      %727 = vmatpush1.bf16.msra.mxu0 0
      %728 = vmatprep.subr.bf16.mxu0 0
      %729 = vmatpush1.bf16.msra.mxu0 0
      %730 = vmatprep.subr.bf16.mxu0 0
      %731 = vmatpush1.bf16.msra.mxu0 %v716
      %732 = vmatprep.subr.bf16.mxu0 0
      %733 = vmatpush1.bf16.msra.mxu0 %v667
      %734 = vmatprep.subr.bf16.mxu0 0
      %735 = vmatpush2.bf16.msra.mxu0 0
      %736 = vmatprep.subr.bf16.mxu0 0
      %737 = vmatpush2.bf16.msra.mxu0 0
      %738 = vmatprep.subr.bf16.mxu0 0
      %739 = vmatpush2.bf16.msra.mxu0 0
      %740 = vmatprep.subr.bf16.mxu0 0
      %741 = vmatpush2.bf16.msra.mxu0 0
      %742 = vmatprep.subr.bf16.mxu0 0
      %743 = vmatpush2.bf16.msra.mxu0 0
      %744 = vmatprep.subr.bf16.mxu0 0
      %745 = vmatpush2.bf16.msra.mxu0 0
      %746 = vmatprep.subr.bf16.mxu0 0
      %747 = vmatpush2.bf16.msra.mxu0 0
      %748 = vmatprep.subr.bf16.mxu0 0
      %749 = vmatpush2.bf16.msra.mxu0 0
      %750 = vmatprep.mubr.bf16.mxu0 0
      %751 = vmatmul.mubr.bf16.gmra.mxu0 %v671
      %v752 = vpop.f32.mrf.mxu0
      %v753 = vadd.f32 %v468, %v752
      %v754 = vpop.f32.mrf.mxu0
      %v755 = vpop.f32.mrf.mxu0
      %v756 = vadd.f32 %v471, %v755
      %v757 = vpop.f32.mrf.mxu0
      %758 = vmatprep.mubr.bf16.mxu0 0
      %759 = vmatmul.mubr.bf16.gmra.mxu0 %v674
      %v760 = vpop.f32.mrf.mxu0
      %v761 = vadd.f32 %v476, %v760
      %v762 = vpop.f32.mrf.mxu0
      %v763 = vpop.f32.mrf.mxu0
      %v764 = vadd.f32 %v479, %v763
      %v765 = vpop.f32.mrf.mxu0
      %766 = vmatprep.mubr.bf16.mxu0 0
      %767 = vmatmul.mubr.bf16.gmra.mxu0 %v677
      %v768 = vpop.f32.mrf.mxu0
      %v769 = vadd.f32 %v484, %v768
      %v770 = vpop.f32.mrf.mxu0
      %v771 = vpop.f32.mrf.mxu0
      %v772 = vadd.f32 %v487, %v771
      %v773 = vpop.f32.mrf.mxu0
      %774 = vmatprep.mubr.bf16.mxu0 0
      %775 = vmatmul.mubr.bf16.gmra.mxu0 %v680
      %v776 = vpop.f32.mrf.mxu0
      %v777 = vadd.f32 %v492, %v776
      %v778 = vpop.f32.mrf.mxu0
      %v779 = vpop.f32.mrf.mxu0
      %v780 = vadd.f32 %v495, %v779
      %v781 = vpop.f32.mrf.mxu0
      %782 = vmatprep.mubr.bf16.mxu0 0
      %783 = vmatmul.mubr.bf16.gmra.mxu0 %v683
      %v784 = vpop.f32.mrf.mxu0
      %v785 = vadd.f32 %v500, %v784
      %v786 = vpop.f32.mrf.mxu0
      %v787 = vpop.f32.mrf.mxu0
      %v788 = vadd.f32 %v503, %v787
      %v789 = vpop.f32.mrf.mxu0
      %790 = vmatprep.mubr.bf16.mxu0 0
      %791 = vmatmul.mubr.bf16.gmra.mxu0 %v686
      %v792 = vpop.f32.mrf.mxu0
      %v793 = vadd.f32 %v508, %v792
      %v794 = vpop.f32.mrf.mxu0
      %v795 = vpop.f32.mrf.mxu0
      %v796 = vadd.f32 %v511, %v795
      %v797 = vpop.f32.mrf.mxu0
      %798 = vmatprep.mubr.bf16.mxu0 0
      %799 = vmatmul.mubr.bf16.gmra.mxu0 %v689
      %v800 = vpop.f32.mrf.mxu0
      %v801 = vadd.f32 %v516, %v800
      %v802 = vpop.f32.mrf.mxu0
      %v803 = vpop.f32.mrf.mxu0
      %v804 = vadd.f32 %v519, %v803
      %v805 = vpop.f32.mrf.mxu0
      %806 = vmatprep.mubr.bf16.mxu0 0
      %807 = vmatmul.mubr.bf16.gmra.mxu0 %v692
      %v808 = vpop.f32.mrf.mxu0
      %v809 = vadd.f32 %v524, %v808
      %v810 = vpop.f32.mrf.mxu0
      %v811 = vpop.f32.mrf.mxu0
      %v812 = vadd.f32 %v527, %v811
      %v813 = vpop.f32.mrf.mxu0
      %814 = vmatprep.mubr.bf16.mxu0 0
      %815 = vmatmul.mubr.bf16.gmra.mxu0 %v695
      %v816 = vpop.f32.mrf.mxu0
      %v817 = vadd.f32 %v532, %v816
      %v818 = vpop.f32.mrf.mxu0
      %v819 = vpop.f32.mrf.mxu0
      %v820 = vadd.f32 %v535, %v819
      %v821 = vpop.f32.mrf.mxu0
      %822 = vmatprep.mubr.bf16.mxu0 0
      %823 = vmatmul.mubr.bf16.gmra.mxu0 %v698
      %v824 = vpop.f32.mrf.mxu0
      %v825 = vadd.f32 %v540, %v824
      %v826 = vpop.f32.mrf.mxu0
      %v827 = vpop.f32.mrf.mxu0
      %v828 = vadd.f32 %v543, %v827
      %v829 = vpop.f32.mrf.mxu0
      %830 = vmatprep.mubr.bf16.mxu0 0
      %831 = vmatmul.mubr.bf16.gmra.mxu0 %v701
      %v832 = vpop.f32.mrf.mxu0
      %v833 = vadd.f32 %v548, %v832
      %v834 = vpop.f32.mrf.mxu0
      %v835 = vpop.f32.mrf.mxu0
      %v836 = vadd.f32 %v551, %v835
      %v837 = vpop.f32.mrf.mxu0
      %838 = vmatprep.mubr.bf16.mxu0 0
      %839 = vmatmul.mubr.bf16.gmra.mxu0 %v704
      %v840 = vpop.f32.mrf.mxu0
      %v841 = vadd.f32 %v556, %v840
      %v842 = vpop.f32.mrf.mxu0
      %v843 = vpop.f32.mrf.mxu0
      %v844 = vadd.f32 %v559, %v843
      %v845 = vpop.f32.mrf.mxu0
      %846 = vmatprep.mubr.bf16.mxu0 0
      %847 = vmatmul.mubr.bf16.gmra.mxu0 %v707
      %v848 = vpop.f32.mrf.mxu0
      %v849 = vadd.f32 %v564, %v848
      %v850 = vpop.f32.mrf.mxu0
      %v851 = vpop.f32.mrf.mxu0
      %v852 = vadd.f32 %v567, %v851
      %v853 = vpop.f32.mrf.mxu0
      %854 = vmatprep.mubr.bf16.mxu0 0
      %855 = vmatmul.mubr.bf16.gmra.mxu0 %v710
      %v856 = vpop.f32.mrf.mxu0
      %v857 = vadd.f32 %v572, %v856
      %v858 = vpop.f32.mrf.mxu0
      %v859 = vpop.f32.mrf.mxu0
      %v860 = vadd.f32 %v575, %v859
      %v861 = vpop.f32.mrf.mxu0
      %862 = vmatprep.mubr.bf16.mxu0 0
      %863 = vmatmul.mubr.bf16.gmra.mxu0 %v713
      %v864 = vpop.f32.mrf.mxu0
      %v865 = vadd.f32 %v580, %v864
      %v866 = vpop.f32.mrf.mxu0
      %v867 = vpop.f32.mrf.mxu0
      %v868 = vadd.f32 %v583, %v867
      %v869 = vpop.f32.mrf.mxu0
      %870 = vdwg.mxu0
      %v871 = vld [vmem:[%s2] sm:$0x1]
      %v873 = vlaneseq
      %v874 = vshrl.u32 %v873, 7
      %v875 = vsub.s32 0, %v874
      %v876 = vrot.slane %v871, %v875
      %v878 = vmul.f32 %v753, %v876
      %v879 = vmul.f32 %v756, %v876
      %v880 = vmul.f32 %v761, %v876
      %v881 = vmul.f32 %v764, %v876
      %v882 = vmul.f32 %v769, %v876
      %v883 = vmul.f32 %v772, %v876
      %v884 = vmul.f32 %v777, %v876
      %v885 = vmul.f32 %v780, %v876
      %v886 = vmul.f32 %v785, %v876
      %v887 = vmul.f32 %v788, %v876
      %v888 = vmul.f32 %v793, %v876
      %v889 = vmul.f32 %v796, %v876
      %v890 = vmul.f32 %v801, %v876
      %v891 = vmul.f32 %v804, %v876
      %v892 = vmul.f32 %v809, %v876
      %v893 = vmul.f32 %v812, %v876
      %v894 = vmul.f32 %v817, %v876
      %v895 = vmul.f32 %v820, %v876
      %v896 = vmul.f32 %v825, %v876
      %v897 = vmul.f32 %v828, %v876
      %v898 = vmul.f32 %v833, %v876
      %v899 = vmul.f32 %v836, %v876
      %v900 = vmul.f32 %v841, %v876
      %v901 = vmul.f32 %v844, %v876
      %v902 = vmul.f32 %v849, %v876
      %v903 = vmul.f32 %v852, %v876
      %v904 = vmul.f32 %v857, %v876
      %v905 = vmul.f32 %v860, %v876
      %v906 = vmul.f32 %v865, %v876
      %v907 = vmul.f32 %v868, %v876
      %v908 = vld [vmem:[%s3] sm:$0x1]
      %v910 = vlaneseq
      %v911 = vshrl.u32 %v910, 7
      %v912 = vsub.s32 0, %v911
      %v913 = vrot.slane %v908, %v912
      %v915 = vadd.f32 %v878, %v913
      %v916 = vadd.f32 %v879, %v913
      %v917 = vadd.f32 %v880, %v913
      %v918 = vadd.f32 %v881, %v913
      %v919 = vadd.f32 %v882, %v913
      %v920 = vadd.f32 %v883, %v913
      %v921 = vadd.f32 %v884, %v913
      %v922 = vadd.f32 %v885, %v913
      %v923 = vadd.f32 %v886, %v913
      %v924 = vadd.f32 %v887, %v913
      %v925 = vadd.f32 %v888, %v913
      %v926 = vadd.f32 %v889, %v913
      %v927 = vadd.f32 %v890, %v913
      %v928 = vadd.f32 %v891, %v913
      %v929 = vadd.f32 %v892, %v913
      %v930 = vadd.f32 %v893, %v913
      %v931 = vadd.f32 %v894, %v913
      %v932 = vadd.f32 %v895, %v913
      %v933 = vadd.f32 %v896, %v913
      %v934 = vadd.f32 %v897, %v913
      %v935 = vadd.f32 %v898, %v913
      %v936 = vadd.f32 %v899, %v913
      %v937 = vadd.f32 %v900, %v913
      %v938 = vadd.f32 %v901, %v913
      %v939 = vadd.f32 %v902, %v913
      %v940 = vadd.f32 %v903, %v913
      %v941 = vadd.f32 %v904, %v913
      %v942 = vadd.f32 %v905, %v913
      %v943 = vadd.f32 %v906, %v913
      %v944 = vadd.f32 %v907, %v913
      %v945 = vpack.c.bf16 %v916, %v915
      %v946 = vpack.c.bf16 %v918, %v917
      %v947 = vpack.c.bf16 %v920, %v919
      %v948 = vpack.c.bf16 %v922, %v921
      %v949 = vpack.c.bf16 %v924, %v923
      %v950 = vpack.c.bf16 %v926, %v925
      %v951 = vpack.c.bf16 %v928, %v927
      %v952 = vpack.c.bf16 %v930, %v929
      %v953 = vpack.c.bf16 %v932, %v931
      %v954 = vpack.c.bf16 %v934, %v933
      %v955 = vpack.c.bf16 %v936, %v935
      %v956 = vpack.c.bf16 %v938, %v937
      %v957 = vpack.c.bf16 %v940, %v939
      %v958 = vpack.c.bf16 %v942, %v941
      %v959 = vpack.c.bf16 %v944, %v943
      %v975 = vunpack.c.l.b16 %v945
      %v976 = vunpack.c.h.b16 %v945
      %v977 = vunpack.c.l.b16 %v946
      %v978 = vunpack.c.h.b16 %v946
      %v979 = vunpack.c.l.b16 %v947
      %v980 = vunpack.c.h.b16 %v947
      %v981 = vunpack.c.l.b16 %v948
      %v982 = vunpack.c.h.b16 %v948
      %v983 = vunpack.c.l.b16 %v949
      %v984 = vunpack.c.h.b16 %v949
      %v985 = vunpack.c.l.b16 %v950
      %v986 = vunpack.c.h.b16 %v950
      %v987 = vunpack.c.l.b16 %v951
      %v988 = vunpack.c.h.b16 %v951
      %v989 = vunpack.c.l.b16 %v952
      %v990 = vunpack.c.h.b16 %v952
      %v991 = vunpack.c.l.b16 %v953
      %v992 = vunpack.c.h.b16 %v953
      %v993 = vunpack.c.l.b16 %v954
      %v994 = vunpack.c.h.b16 %v954
      %v995 = vunpack.c.l.b16 %v955
      %v996 = vunpack.c.h.b16 %v955
      %v997 = vunpack.c.l.b16 %v956
      %v998 = vunpack.c.h.b16 %v956
      %v999 = vunpack.c.l.b16 %v957
      %v1000 = vunpack.c.h.b16 %v957
      %v1001 = vunpack.c.l.b16 %v958
      %v1002 = vunpack.c.h.b16 %v958
      %v1003 = vunpack.c.l.b16 %v959
      %v1004 = vunpack.c.h.b16 %v959
      %v1005 = vpack.c.b16 %v975, %v975
      %v1006 = vpack.c.b16 %v976, %v976
      %v1007 = vpack.c.b16 %v977, %v977
      %v1008 = vpack.c.b16 %v978, %v978
      %v1009 = vpack.c.b16 %v979, %v979
      %v1010 = vpack.c.b16 %v980, %v980
      %v1011 = vpack.c.b16 %v981, %v981
      %v1012 = vpack.c.b16 %v982, %v982
      %v1013 = vpack.c.b16 %v983, %v983
      %v1014 = vpack.c.b16 %v984, %v984
      %v1015 = vpack.c.b16 %v985, %v985
      %v1016 = vpack.c.b16 %v986, %v986
      %v1017 = vpack.c.b16 %v987, %v987
      %v1018 = vpack.c.b16 %v988, %v988
      %v1019 = vpack.c.b16 %v989, %v989
      %v1020 = vpack.c.b16 %v990, %v990
      %v1021 = vpack.c.b16 %v991, %v991
      %v1022 = vpack.c.b16 %v992, %v992
      %v1023 = vpack.c.b16 %v993, %v993
      %v1024 = vpack.c.b16 %v994, %v994
      %v1025 = vpack.c.b16 %v995, %v995
      %v1026 = vpack.c.b16 %v996, %v996
      %v1027 = vpack.c.b16 %v997, %v997
      %v1028 = vpack.c.b16 %v998, %v998
      %v1029 = vpack.c.b16 %v999, %v999
      %v1030 = vpack.c.b16 %v1000, %v1000
      %v1031 = vpack.c.b16 %v1001, %v1001
      %v1032 = vpack.c.b16 %v1002, %v1002
      %v1033 = vpack.c.b16 %v1003, %v1003
      %v1034 = vpack.c.b16 %v1004, %v1004
      %vm1065 = vcmask 257024
      %1066 = vst.msk [vmem:[%s219] sm:$0xf] %vm1065, %v1005
      %1067 = vst.msk [vmem:[%s219 + $0x4] sm:$0xf] %vm1065, %v1006
      %1068 = vst.msk [vmem:[%s219 + $0x8] sm:$0xf] %vm1065, %v1007
      %1069 = vst.msk [vmem:[%s219 + $0xc] sm:$0xf] %vm1065, %v1008
      %1070 = vst.msk [vmem:[%s219 + $0x10] sm:$0xf] %vm1065, %v1009
      %1071 = vst.msk [vmem:[%s219 + $0x14] sm:$0xf] %vm1065, %v1010
      %1072 = vst.msk [vmem:[%s219 + $0x18] sm:$0xf] %vm1065, %v1011
      %1073 = vst.msk [vmem:[%s219 + $0x1c] sm:$0xf] %vm1065, %v1012
      %1074 = vst.msk [vmem:[%s219 + $0x20] sm:$0xf] %vm1065, %v1013
      %1075 = vst.msk [vmem:[%s219 + $0x24] sm:$0xf] %vm1065, %v1014
      %1076 = vst.msk [vmem:[%s219 + $0x28] sm:$0xf] %vm1065, %v1015
      %1077 = vst.msk [vmem:[%s219 + $0x2c] sm:$0xf] %vm1065, %v1016
      %1078 = vst.msk [vmem:[%s219 + $0x30] sm:$0xf] %vm1065, %v1017
      %1079 = vst.msk [vmem:[%s219 + $0x34] sm:$0xf] %vm1065, %v1018
      %1080 = vst.msk [vmem:[%s219 + $0x38] sm:$0xf] %vm1065, %v1019
      %1081 = vst.msk [vmem:[%s219 + $0x3c] sm:$0xf] %vm1065, %v1020
      %1082 = vst.msk [vmem:[%s219 + $0x40] sm:$0xf] %vm1065, %v1021
      %1083 = vst.msk [vmem:[%s219 + $0x44] sm:$0xf] %vm1065, %v1022
      %1084 = vst.msk [vmem:[%s219 + $0x48] sm:$0xf] %vm1065, %v1023
      %1085 = vst.msk [vmem:[%s219 + $0x4c] sm:$0xf] %vm1065, %v1024
      %1086 = vst.msk [vmem:[%s219 + $0x50] sm:$0xf] %vm1065, %v1025
      %1087 = vst.msk [vmem:[%s219 + $0x54] sm:$0xf] %vm1065, %v1026
      %1088 = vst.msk [vmem:[%s219 + $0x58] sm:$0xf] %vm1065, %v1027
      %1089 = vst.msk [vmem:[%s219 + $0x5c] sm:$0xf] %vm1065, %v1028
      %1090 = vst.msk [vmem:[%s219 + $0x60] sm:$0xf] %vm1065, %v1029
      %1091 = vst.msk [vmem:[%s219 + $0x64] sm:$0xf] %vm1065, %v1030
      %1092 = vst.msk [vmem:[%s219 + $0x68] sm:$0xf] %vm1065, %v1031
      %1093 = vst.msk [vmem:[%s219 + $0x6c] sm:$0xf] %vm1065, %v1032
      %1094 = vst.msk [vmem:[%s219 + $0x70] sm:$0xf] %vm1065, %v1033
      %1095 = vst.msk [vmem:[%s219 + $0x74] sm:$0xf] %vm1065, %v1034
      %s1096 = smul.u32 30, %s20
      %p1097 = scmp.lt.s32.totalorder %s19, 1
      %s1098 = scalar_select %p1097, %s19, 1
      %p1099 = scmp.lt.s32.totalorder %s1096, 29
      %s1100 = scalar_select %p1099, %s1096, 29
      %s1101 = smul.addr %s1098, 30
      %s1102 = sadd.s32 %s1100, %s1101
      %s1103 = smul.addr %s1102, 4
      %s1104 = scalar_lea.vmem %s4, %s1103
      // Predicated region
      $region37: #{_lambda_.1} parent=35 // pred_check
        %p1105 = pneg %p136
      $region38: #{_lambda_.1} parent=35 // pred_check_branch
        %1107 = sbr.rel (%p1105) target = $region40
      $region39: #{_lambda_.1} parent=35 // pred_region
        %s1108 = smul.u32 30, %s20
      $region40: #{_lambda_.1} parent=35 // pred_fallthru
        _
    $region36: #{_lambda_.1} parent=5 // pred_fallthru
      _
    %p1109 = scmp.le.s32.totalorder 2, %s10
    // Predicated region
    $region41: #{_lambda_.1} parent=5 // pred_check
      %p1110 = pneg %p1109
    $region42: #{_lambda_.1} parent=5 // pred_check_branch
      %1112 = sbr.rel (%p1110) target = $region44
    $region43: #{_lambda_.1} parent=5 // pred_region
      %s1113 = ssub.s32 %s10, 2
      // Predicated region
      $region45: #{_lambda_.1} parent=43 // pred_check
        %p1114 = pneg %p142
      $region46: #{_lambda_.1} parent=43 // pred_check_branch
        %1116 = sbr.rel (%p1114) target = $region48
      $region47: #{_lambda_.1} parent=43 // pred_region
        %s1117 = smul.u32 30, %s22
        %p1118 = scmp.lt.s32.totalorder %s21, 1
        %s1119 = scalar_select %p1118, %s21, 1
        %p1120 = scmp.lt.s32.totalorder %s1117, 29
        %s1121 = scalar_select %p1120, %s1117, 29
        %s1122 = smul.addr %s1119, 30
        %s1123 = sadd.s32 %s1121, %s1122
        %s1124 = smul.addr %s1123, 4
        %s1125 = scalar_lea.vmem %s4, %s1124
      $region48: #{_lambda_.1} parent=43 // pred_fallthru
        _
    $region44: #{_lambda_.1} parent=5 // pred_fallthru
      _
  $region6: #{_lambda_.1} parent=0 // loop_footer
    %s14 = sadd.s32 1, %s10
  $region7: #{_lambda_.1} parent=0 // loop_footer_branch
    %9 = sbr.rel target = $region3
  $region8: #{_lambda_.1} parent=0 // loop_exit
    _

</llo_original>
